<compile_context>
chip_gen: v7x
topology: tpu7x:2x2x1
jax: 0.10.0
libtpu: 0.0.40
codegen_flags: <defaults>
</compile_context>

<pallas_src>
import functools

import jax
import jax.numpy as jnp
from jax.experimental import pallas as pl
from jax.experimental.pallas import tpu as pltpu


def _vmem_capacity_bytes() -> int:
    try:
        return int(pltpu.get_tpu_info().vmem_capacity_bytes)
    except Exception:
        return 64 * 1024 * 1024  # conservative fallback (v7x-sized VMEM)


def _pick_tiling(c: int, in_itemsize: int):
    """Choose block_n from the VMEM budget: 2 inputs x 2 pipeline buffers <= cap/4."""
    cap = _vmem_capacity_bytes()
    budget = cap // 4                          # input working-set target
    bytes_per_row = 2 * c * in_itemsize        # one pred row + one target row
    max_rows = max(8, budget // (2 * bytes_per_row))   # x2 for double-buffering
    block_n = max(8, (min(max_rows, 8192) // 8) * 8)
    vmem_limit = int(cap // 2)                 # explicit scoped-VMEM limit, with headroom
    return block_n, vmem_limit


def _kldiv_logits_kernel(pred_ref, tgt_ref, kl_ref, *fac_refs,
                         weighted: bool, n_rows: int, block_n: int, ragged: bool):
    """One (block_n, C) row tile -> independent per-block scalar partial sums."""
    pred = pred_ref[...].astype(jnp.float32)   # (block_n, C) raw logits
    tgt = tgt_ref[...].astype(jnp.float32)     # (block_n, C) unnormalized targets

    if ragged:
        # Last tile may extend past the batch: zero invalid rows so any garbage that
        # the edge DMA brought in can never reach a reduction.
        i = pl.program_id(0)
        row = jax.lax.broadcasted_iota(jnp.int32, (block_n, 1), 0) + i * block_n
        valid = row < n_rows                                     # (block_n, 1)
        pred = jnp.where(valid, pred, 0.0)
        tgt = jnp.where(valid, tgt, 0.0)

    # --- target normalization along the class axis (dim=1) ---
    factor = jnp.sum(tgt, axis=1, keepdims=True)                 # (block_n, 1)
    safe_factor = jnp.where(factor > 0.0, factor, 1.0)           # invalid/zero rows: avoid 0/0
    t = tgt / safe_factor

    # --- log_softmax(pred, dim=1), numerically stable ---
    m = jnp.max(pred, axis=1, keepdims=True)
    z = pred - m
    lse = jnp.log(jnp.sum(jnp.exp(z), axis=1, keepdims=True))
    log_p = z - lse

    # --- fused KL pointwise: xlogy(t, t) - t*log_p == where(t>0, t*(log t - log_p), 0)
    # (log_p is finite, so the t == 0 branch is exactly 0; a real all-zero target row
    #  contributes 0 here instead of the NaN PyTorch would produce.)
    safe_t = jnp.where(t > 0.0, t, 1.0)
    pointwise = jnp.where(t > 0.0, t * (jnp.log(safe_t) - log_p), 0.0)

    # Lane reduce then sublane reduce -> one scalar partial per block (tiny writeback).
    row_kl = jnp.sum(pointwise, axis=1, keepdims=True)           # (block_n, 1)
    kl_ref[...] = jnp.sum(row_kl, axis=0, keepdims=True)[None]   # (1, 1, 1)

    if weighted:  # static flag: skip the factor reduction entirely when unweighted
        fac_refs[0][...] = jnp.sum(factor, axis=0, keepdims=True)[None]   # (1, 1, 1)


def kldiv_logits_loss(pred, target, *, weighted: bool = False, block_n: int | None = None):
    """Pallas wrapper. pred/target: [N, C] (f32 or bf16). Returns a scalar f32 loss."""
    n, c = pred.shape
    assert target.shape == (n, c)
    orig_n = n

    itemsize = max(jnp.dtype(pred.dtype).itemsize, jnp.dtype(target.dtype).itemsize)

    # Tiny batches (< 8 rows): zero-pad up to the 8-sublane minimum (negligible copy;
    # padded rows are excluded by the in-kernel validity mask anyway).
    if n < 8:
        pad = ((0, 8 - n), (0, 0))
        pred = jnp.pad(pred, pad)
        target = jnp.pad(target, pad)
        n = 8

    if block_n is None:
        block_n, vmem_limit = _pick_tiling(c, itemsize)
    else:
        block_n = max(8, (block_n // 8) * 8)
        vmem_limit = _vmem_capacity_bytes() // 2
    block_n = min(block_n, (n // 8) * 8)       # never exceed the (8-aligned) batch extent

    grid = pl.cdiv(n, block_n)
    ragged = (grid * block_n != orig_n)        # last tile partial and/or tiny-batch pad

    kernel = functools.partial(_kldiv_logits_kernel, weighted=weighted,
                               n_rows=orig_n, block_n=block_n, ragged=ragged)

    out_shape = [jax.ShapeDtypeStruct((grid, 1, 1), jnp.float32)]
    out_specs = [pl.BlockSpec((1, 1, 1), lambda i: (i, 0, 0))]
    if weighted:
        out_shape.append(jax.ShapeDtypeStruct((grid, 1, 1), jnp.float32))
        out_specs.append(pl.BlockSpec((1, 1, 1), lambda i: (i, 0, 0)))

    cost = pl.CostEstimate(
        flops=10 * orig_n * c,
        transcendentals=2 * orig_n * c,
        bytes_accessed=2 * orig_n * c * itemsize + grid * 4 * len(out_shape),
    )

    outs = pl.pallas_call(
        kernel,
        out_shape=out_shape,
        grid_spec=pltpu.PrefetchScalarGridSpec(
            num_scalar_prefetch=0,
            grid=(grid,),
            in_specs=[
                pl.BlockSpec((block_n, c), lambda i: (i, 0)),
                pl.BlockSpec((block_n, c), lambda i: (i, 0)),
            ],
            out_specs=out_specs,
        ),
        compiler_params=pltpu.CompilerParams(
            dimension_semantics=("parallel",),      # independent per-block partials
            vmem_limit_bytes=int(vmem_limit),
        ),
        cost_estimate=cost,
    )(pred, target)

    loss = jnp.sum(outs[0]) / jnp.float32(orig_n)            # reduction="batchmean"
    if weighted:
        loss = loss * (jnp.sum(outs[1]) / jnp.float32(orig_n))   # factor.mean() over [N, 1]
    return loss


def _reference(pred, target, weighted=False):
    """Pure-JAX reference mirroring the PyTorch module (compute in f32)."""
    pred = pred.astype(jnp.float32)
    target = target.astype(jnp.float32)
    factor = jnp.sum(target, axis=1, keepdims=True)
    t = target / factor
    log_p = jax.nn.log_softmax(pred, axis=1)
    safe_t = jnp.where(t > 0.0, t, 1.0)
    pointwise = jnp.where(t > 0.0, t * jnp.log(safe_t), 0.0) - t * log_p
    loss = jnp.sum(pointwise) / pred.shape[0]
    if weighted:
        loss = loss * jnp.mean(factor)
    return loss


if __name__ == "__main__":
    key = jax.random.PRNGKey(0)
    k_pred, k_tgt = jax.random.split(key)

    N, C = 16, 32  # small shapes: batch=16 rows, 32 classes
    pred = jax.random.normal(k_pred, (N, C), dtype=jnp.float32)
    # strictly-positive unnormalized targets (so factor > 0), like soft label counts
    target = jax.random.uniform(k_tgt, (N, C), dtype=jnp.float32,
                                minval=0.05, maxval=1.0)

    loss = kldiv_logits_loss(pred, target, weighted=False)
    loss_w = kldiv_logits_loss(pred, target, weighted=True)
    jax.block_until_ready((loss, loss_w))
    assert jnp.allclose(loss, _reference(pred, target, False), rtol=1e-5, atol=1e-6)
    assert jnp.allclose(loss_w, _reference(pred, target, True), rtol=1e-5, atol=1e-6)

    # Ragged batch: exercises the no-pad edge-tile path + in-kernel row-validity mask.
    N2 = 13
    pred2, tgt2 = pred[:N2], target[:N2]
    loss2 = kldiv_logits_loss(pred2, tgt2, weighted=True)
    jax.block_until_ready(loss2)
    assert jnp.allclose(loss2, _reference(pred2, tgt2, True), rtol=1e-5, atol=1e-6)

    # Multi-block grid (forced small block_n) with per-block scalar partials.
    k3p, k3t = jax.random.split(jax.random.PRNGKey(0), 2)
    N3, C3 = 32, 128
    pred3 = jax.random.normal(k3p, (N3, C3), dtype=jnp.float32)
    tgt3 = jax.random.uniform(k3t, (N3, C3), dtype=jnp.float32, minval=0.05, maxval=1.0)
    loss3 = kldiv_logits_loss(pred3, tgt3, weighted=True, block_n=8)
    jax.block_until_ready(loss3)
    assert jnp.allclose(loss3, _reference(pred3, tgt3, True), rtol=1e-5, atol=1e-6)

    # bf16 inputs (half the HBM traffic; compute stays f32 inside the kernel).
    pred_bf = pred.astype(jnp.bfloat16)
    tgt_bf = target.astype(jnp.bfloat16)
    loss_bf = kldiv_logits_loss(pred_bf, tgt_bf, weighted=False)
    jax.block_until_ready(loss_bf)
    assert jnp.allclose(loss_bf, _reference(pred_bf, tgt_bf, False),
                        rtol=1e-4, atol=1e-5)

    print("KERNEL_OK")
</pallas_src>

<mosaic_0001>
module attributes {stable_mosaic.version = 11 : i64} {
  func.func @_kldiv_logits_kernel(%arg0: i32, %arg1: memref<16x32xf32, #tpu.memory_space<vmem>>, %arg2: memref<16x32xf32, #tpu.memory_space<vmem>>, %arg3: memref<1x1x1xf32, #tpu.memory_space<vmem>>) attributes {dimension_semantics = [#tpu.dimension_semantics<parallel>], iteration_bounds = array<i64: 1>, scalar_prefetch = 0 : i64, scratch_operands = 0 : i64, tpu.core_type = #tpu.core_type<tc>, window_params = [{transform_indices = @transform_0, window_bounds = array<i64: 16, 32>}, {transform_indices = @transform_1, window_bounds = array<i64: 16, 32>}, {transform_indices = @transform_2, window_bounds = array<i64: 1, 1, 1>}]} {
    %c0 = arith.constant 0 : index
    %c0_0 = arith.constant 0 : index
    %0 = vector.load %arg1[%c0, %c0_0] : memref<16x32xf32, #tpu.memory_space<vmem>>, vector<16x32xf32>
    %c0_1 = arith.constant 0 : index
    %c0_2 = arith.constant 0 : index
    %1 = vector.load %arg2[%c0_1, %c0_2] : memref<16x32xf32, #tpu.memory_space<vmem>>, vector<16x32xf32>
    %cst = arith.constant dense<0.000000e+00> : vector<16xf32>
    %2 = vector.multi_reduction <add>, %1, %cst [1] : vector<16x32xf32> to vector<16xf32>
    %3 = vector.shape_cast %2 : vector<16xf32> to vector<16x1xf32>
    %cst_3 = arith.constant 0.000000e+00 : f32
    %4 = vector.broadcast %cst_3 : f32 to vector<16x1xf32>
    %5 = arith.cmpf ogt, %3, %4 : vector<16x1xf32>
    %cst_4 = arith.constant 1.000000e+00 : f32
    %6 = vector.broadcast %cst_4 : f32 to vector<16x1xf32>
    %7 = arith.select %5, %3, %6 : vector<16x1xi1>, vector<16x1xf32>
    %8 = vector.broadcast %7 : vector<16x1xf32> to vector<16x32xf32>
    %9 = arith.divf %1, %8 : vector<16x32xf32>
    %cst_5 = arith.constant dense<0xFF800000> : vector<16xf32>
    %10 = vector.multi_reduction <maximumf>, %0, %cst_5 [1] : vector<16x32xf32> to vector<16xf32>
    %11 = vector.shape_cast %10 : vector<16xf32> to vector<16x1xf32>
    %12 = vector.broadcast %11 : vector<16x1xf32> to vector<16x32xf32>
    %13 = arith.subf %0, %12 : vector<16x32xf32>
    %14 = math.exp %13 : vector<16x32xf32>
    %cst_6 = arith.constant dense<0.000000e+00> : vector<16xf32>
    %15 = vector.multi_reduction <add>, %14, %cst_6 [1] : vector<16x32xf32> to vector<16xf32>
    %16 = vector.shape_cast %15 : vector<16xf32> to vector<16x1xf32>
    %17 = math.log %16 : vector<16x1xf32>
    %18 = vector.broadcast %17 : vector<16x1xf32> to vector<16x32xf32>
    %19 = arith.subf %13, %18 : vector<16x32xf32>
    %cst_7 = arith.constant 0.000000e+00 : f32
    %20 = vector.broadcast %cst_7 : f32 to vector<16x32xf32>
    %21 = arith.cmpf ogt, %9, %20 : vector<16x32xf32>
    %cst_8 = arith.constant 1.000000e+00 : f32
    %22 = vector.broadcast %cst_8 : f32 to vector<16x32xf32>
    %23 = arith.select %21, %9, %22 : vector<16x32xi1>, vector<16x32xf32>
    %cst_9 = arith.constant 0.000000e+00 : f32
    %24 = vector.broadcast %cst_9 : f32 to vector<16x32xf32>
    %25 = arith.cmpf ogt, %9, %24 : vector<16x32xf32>
    %26 = math.log %23 : vector<16x32xf32>
    %27 = arith.subf %26, %19 : vector<16x32xf32>
    %28 = arith.mulf %9, %27 : vector<16x32xf32>
    %cst_10 = arith.constant 0.000000e+00 : f32
    %29 = vector.broadcast %cst_10 : f32 to vector<16x32xf32>
    %30 = arith.select %25, %28, %29 : vector<16x32xi1>, vector<16x32xf32>
    %cst_11 = arith.constant dense<0.000000e+00> : vector<16xf32>
    %31 = vector.multi_reduction <add>, %30, %cst_11 [1] : vector<16x32xf32> to vector<16xf32>
    %32 = vector.shape_cast %31 : vector<16xf32> to vector<16x1xf32>
    %cst_12 = arith.constant dense<0.000000e+00> : vector<1xf32>
    %33 = vector.multi_reduction <add>, %32, %cst_12 [0] : vector<16x1xf32> to vector<1xf32>
    %34 = vector.shape_cast %33 : vector<1xf32> to vector<1x1xf32>
    %35 = vector.shape_cast %34 : vector<1x1xf32> to vector<1x1x1xf32>
    %c0_13 = arith.constant 0 : index
    %c0_14 = arith.constant 0 : index
    %c0_15 = arith.constant 0 : index
    %36 = vector.load %arg3[%c0_13, %c0_14, %c0_15] : memref<1x1x1xf32, #tpu.memory_space<vmem>>, vector<1x1x1xf32>
    tpu.vector_store %arg3[%c0_13, %c0_14, %c0_15], %35 {strides = array<i32>} : memref<1x1x1xf32, #tpu.memory_space<vmem>>, vector<1x1x1xf32>,
    return
  }
  func.func @transform_0(%arg0: i32) -> (i32, i32) {
    %c0_i32 = arith.constant 0 : i32
    %c0_i32_0 = arith.constant 0 : i32
    return %arg0, %c0_i32 : i32, i32
  }
  func.func @transform_1(%arg0: i32) -> (i32, i32) {
    %c0_i32 = arith.constant 0 : i32
    %c0_i32_0 = arith.constant 0 : i32
    return %arg0, %c0_i32 : i32, i32
  }
  func.func @transform_2(%arg0: i32) -> (i32, i32, i32) {
    %c0_i32 = arith.constant 0 : i32
    %c0_i32_0 = arith.constant 0 : i32
    %c0_i32_1 = arith.constant 0 : i32
    return %arg0, %c0_i32, %c0_i32_0 : i32, i32, i32
  }
}

</mosaic_0001>

<llo_original>
// kernel: tpu_custom_call.1
$region0: #{tpu_custom_call.1}
  #allocation0 [shape = 'u32[]', space=smem, size = 0x4, offset = 0x4, fixed_abs, tag = 'smem constant byte address 0x4 - core index']
  #allocation1 [shape = 'u32[144,128]{1,0:T(1,128)}', space=vmem, size = 0x12000, scoped, tag = 'internal scratch']
  %s0 = inlined_call_operand.hbm [shape: f32[16,32], index: 0, kind: input, shape index: {}]
  %s1 = inlined_call_operand.hbm [shape: f32[16,32], index: 1, kind: input, shape index: {}]
  %s2 = inlined_call_operand.hbm [shape: f32[1,1,1], index: 2, kind: output, shape index: {}]
  %s3 = sld [smem:[#allocation0]]
  $region26: #{tpu_custom_call.1} parent=0
    _
  %s5 = ssub.s32 1, %s3
  %s6 = scalar_select 0, %s5, %s3
  $region1: #{tpu_custom_call.1} parent=0
    #allocation2 [shape = 'u8[8192]{0}', space=vmem, size = 0x2000, scoped, tag = 'input window, operand 0, single buffered']
    #allocation3 [shape = 's32[1]{0}', space=sflag, size = 0x4, scoped, tag = 'scoped memory for tpu_custom_call.1']
    #allocation4 [shape = 's32[1]{0}', space=sflag, size = 0x4, scoped, tag = 'scoped memory for tpu_custom_call.1']
    #allocation5 [shape = 'u8[8192]{0}', space=vmem, size = 0x2000, scoped, tag = 'input window, operand 1, single buffered']
    #allocation6 [shape = 's32[1]{0}', space=sflag, size = 0x4, scoped, tag = 'scoped memory for tpu_custom_call.1']
    #allocation7 [shape = 'u8[512]{0}', space=vmem, size = 0x400, scoped, tag = 'output window, operand 0, single buffered']
    %7 = vsyncpa [#allocation3], 0
    %8 = vsyncpa [#allocation6], 0
    %9 = vsyncpa [#allocation4], 0
    // Predicated region
    $region2: #{tpu_custom_call.1} parent=1 // pred_check
      _
    $region3: #{tpu_custom_call.1} parent=1 // pred_check_branch
      %11 = sbr.rel (0) target = $region5
    $region4: #{tpu_custom_call.1} parent=1 // pred_region
      %s13 = ssub.s32 256, 256
      %14 = vsyncadd [#allocation3], %s13
      %s15 = sshll.u32 [#allocation2], 4
      %s16 = int_to_ptr.vmem [resolvable:$true] %s15
      %21 = dma.hbm_to_vmem [thread:$0]  %s0, 256, %s16, [#allocation3], 128, 128, 8
    $region5: #{tpu_custom_call.1} parent=1 // pred_fallthru
      _
    // Predicated region
    $region6: #{tpu_custom_call.1} parent=1 // pred_check
      _
    $region7: #{tpu_custom_call.1} parent=1 // pred_check_branch
      %23 = sbr.rel (0) target = $region9
    $region8: #{tpu_custom_call.1} parent=1 // pred_region
      %s25 = ssub.s32 256, 256
      %26 = vsyncadd [#allocation6], %s25
      %s27 = sshll.u32 [#allocation5], 4
      %s28 = int_to_ptr.vmem [resolvable:$true] %s27
      %33 = dma.hbm_to_vmem [thread:$0]  %s1, 256, %s28, [#allocation6], 128, 128, 8
    $region9: #{tpu_custom_call.1} parent=1 // pred_fallthru
      _
    // Predicated region
    $region10: #{tpu_custom_call.1} parent=1 // pred_check
      _
    $region11: #{tpu_custom_call.1} parent=1 // pred_check_branch
      %35 = sbr.rel (0) target = $region13
    $region12: #{tpu_custom_call.1} parent=1 // pred_region
      %36 = dma.done [#allocation3], 256
    $region13: #{tpu_custom_call.1} parent=1 // pred_fallthru
      _
    // Predicated region
    $region14: #{tpu_custom_call.1} parent=1 // pred_check
      _
    $region15: #{tpu_custom_call.1} parent=1 // pred_check_branch
      %38 = sbr.rel (0) target = $region17
    $region16: #{tpu_custom_call.1} parent=1 // pred_region
      %39 = dma.done [#allocation6], 256
    $region17: #{tpu_custom_call.1} parent=1 // pred_fallthru
      _
    %v40 = vld [vmem:[#allocation2] sm:$0xff]
    %v41 = vld [vmem:[#allocation2 + $0x8] sm:$0xff]
    %v42 = vld [vmem:[#allocation5] sm:$0xff]
    %v43 = vld [vmem:[#allocation5 + $0x8] sm:$0xff]
    %vm44 = vcmask 261120
    %v45 = vsel %vm44, %v42, 0.0
    %46 = vadd.xlane.f32.xlu0 %v45
    %v47 = vpop.xlane.xlu0 %46
    %v48 = vsel %vm44, %v43, 0.0
    %49 = vadd.xlane.f32.xlu0 %v48
    %v50 = vpop.xlane.xlu0 %49
    %vm51 = vcmp.gt.f32.partialorder %v47, 0.0
    %vm52 = vcmp.gt.f32.partialorder %v50, 0.0
    %v53 = vsel %vm51, %v47, 1.0
    %v54 = vsel %vm52, %v50, 1.0
    %v55 = vrcp.pop %v53
    %v56 = vmul.f32 %v42, %v55
    %v57 = vrcp.pop %v54
    %v58 = vmul.f32 %v43, %v57
    %v59 = vsel %vm44, %v40, -inf
    %60 = vmax.xlane.f32.xlu0 %v59
    %v61 = vpop.xlane.xlu0 %60
    %v62 = vsel %vm44, %v41, -inf
    %63 = vmax.xlane.f32.xlu0 %v62
    %v64 = vpop.xlane.xlu0 %63
    %v65 = vsub.f32 %v40, %v61
    %v66 = vsub.f32 %v41, %v64
    %v67 = vmul.f32 %v65, 1.442695
    %v68 = vpow.pop %v67
    %v69 = vmul.f32 %v66, 1.442695
    %v70 = vpow.pop %v69
    %v71 = vsel %vm44, %v68, 0.0
    %72 = vadd.xlane.f32.xlu0 %v71
    %v73 = vpop.xlane.xlu0 %72
    %v74 = vsel %vm44, %v70, 0.0
    %75 = vadd.xlane.f32.xlu0 %v74
    %v76 = vpop.xlane.xlu0 %75
    %v77 = vlog2.pop %v73
    %v78 = vmul.f32 %v77, 0.6931472
    %v79 = vlog2.pop %v76
    %v80 = vmul.f32 %v79, 0.6931472
    %v81 = vsub.f32 %v65, %v78
    %v82 = vsub.f32 %v66, %v80
    %vm83 = vcmp.gt.f32.partialorder %v56, 0.0
    %vm84 = vcmp.gt.f32.partialorder %v58, 0.0
    %v85 = vsel %vm83, %v56, 1.0
    %v86 = vsel %vm84, %v58, 1.0
    %v87 = vlog2.pop %v85
    %v88 = vmul.f32 %v87, 0.6931472
    %v89 = vlog2.pop %v86
    %v90 = vmul.f32 %v89, 0.6931472
    %v91 = vsub.f32 %v88, %v81
    %v92 = vsub.f32 %v90, %v82
    %v93 = vmul.f32 %v56, %v91
    %v94 = vmul.f32 %v58, %v92
    %v95 = vsel %vm83, %v93, 0.0
    %v96 = vsel %vm84, %v94, 0.0
    %v97 = vsel %vm44, %v95, 0.0
    %98 = vadd.xlane.f32.xlu0 %v97
    %v99 = vpop.xlane.xlu0 %98
    %v100 = vsel %vm44, %v96, 0.0
    %101 = vadd.xlane.f32.xlu0 %v100
    %v102 = vpop.xlane.xlu0 %101
    %v103 = vadd.f32 %v99, %v102
    %v104 = vrot.slane %v103, 4
    %v105 = vadd.f32 %v103, %v104
    %v106 = vrot.slane %v105, 2
    %v107 = vadd.f32 %v105, %v106
    %v108 = vrot.slane %v107, 1
    %v109 = vadd.f32 %v107, %v108
    %vm110 = vcmask 0
    %111 = vst.msk [vmem:[#allocation7] sm:$0x1] %vm110, %v109
    // Predicated region
    $region18: #{tpu_custom_call.1} parent=1 // pred_check
      _
    $region19: #{tpu_custom_call.1} parent=1 // pred_check_branch
      %113 = sbr.rel (0) target = $region21
    $region20: #{tpu_custom_call.1} parent=1 // pred_region
      %s115 = ssub.s32 16, 16
      %116 = vsyncadd [#allocation4], %s115
      %s118 = sshll.u32 [#allocation7], 4
      %s119 = int_to_ptr.vmem [resolvable:$true] %s118
      %121 = dma.vmem_to_hbm [thread:$0]  %s119, 16, %s2, [#allocation4]
    $region21: #{tpu_custom_call.1} parent=1 // pred_fallthru
      _
    // Predicated region
    $region22: #{tpu_custom_call.1} parent=1 // pred_check
      _
    $region23: #{tpu_custom_call.1} parent=1 // pred_check_branch
      %123 = sbr.rel (0) target = $region25
    $region24: #{tpu_custom_call.1} parent=1 // pred_region
      %124 = dma.done [#allocation4], 16
    $region25: #{tpu_custom_call.1} parent=1 // pred_fallthru
      _
    %125 = vsyncpa [#allocation3], 1
    %126 = vsyncpa [#allocation6], 1
    %127 = vsyncpa [#allocation4], 1

</llo_original>
